<compile_context>
chip_gen: v7x
topology: tpu7x:2x2x1
jax: 0.10.0
libtpu: 0.0.40
codegen_flags: <defaults>
</compile_context>

<pallas_src>
import functools
import math

import jax
import jax.numpy as jnp
from jax import lax
from jax.experimental import pallas as pl
from jax.experimental.pallas import tpu as pltpu

EPS = 1e-6


def _vmem_limit_bytes():
    """Generation-aware scoped-VMEM limit (v5e/v6e: 128 MiB phys, v7x: 64 MiB)."""
    try:
        cap = int(pltpu.get_tpu_info().vmem_capacity_bytes)
    except Exception:
        cap = 64 * 1024 * 1024                      # conservative fallback (v7x per-TC)
    return max(16 * 1024 * 1024, min(int(cap * 0.85), 112 * 1024 * 1024))


# --------------------- phase 1: masked single-pass statistics ---------------------

def _stats_kernel(x_ref, mean_ref, m2_ref, *, n_rows, tile_n):
    ni = pl.program_id(1)                            # N-tile index ("arbitrary" axis)

    @pl.when(ni == 0)
    def _():
        mean_ref[...] = jnp.zeros_like(mean_ref)
        m2_ref[...] = jnp.zeros_like(m2_ref)

    x = x_ref[...].astype(jnp.float32)

    # rows already folded in / valid rows in this tile (last tile may be ragged)
    rows_left = n_rows - ni * tile_n
    n_b_i = jnp.minimum(tile_n, rows_left)
    n_a = (ni * tile_n).astype(jnp.float32)
    n_b = n_b_i.astype(jnp.float32)

    row = lax.broadcasted_iota(jnp.int32, (tile_n, 1), 0)
    valid = row < n_b_i                              # mask out-of-bounds garbage rows

    xm = jnp.where(valid, x, 0.0)
    tile_mean = jnp.sum(xm, axis=0, keepdims=True) / n_b
    d = x - tile_mean
    tile_m2 = jnp.sum(jnp.where(valid, d * d, 0.0), axis=0, keepdims=True)

    # Chan's parallel combine: still one pass over x, numerically stable.
    n_ab = n_a + n_b
    delta = tile_mean - mean_ref[...]
    mean_ref[...] = mean_ref[...] + delta * (n_b / n_ab)
    m2_ref[...] = m2_ref[...] + tile_m2 + (delta * delta) * (n_a * n_b / n_ab)


# --------------- phase 2: tiny encoder/decoder MLPs -> fused scale/shift ---------------

def _mlp_kernel(mean_ref, m2_ref,
                w_se_ref, b_se_ref, w_smd_ref, b_smd_ref, w_ssd_ref, b_ssd_ref,
                w_re_ref, b_re_ref, w_rbd_ref, b_rbd_ref, w_rgd_ref, b_rgd_ref,
                bias_beta_ref, bias_gamma_ref, lam_ref,
                scale_ref, shift_ref, *, n_rows):
    x_mean = mean_ref[...]                                           # (1, C)
    var = jnp.maximum(m2_ref[...], 0.0) / jnp.float32(n_rows - 1)    # unbiased (torch.var)
    x_std = jnp.sqrt(var) + EPS

    # TODO(synk): nn.Dropout(p=0.3) on x_mean / x_std treated as identity
    # (eval-mode semantics); training-mode stochastic dropout not reproduced.

    def lin(v, w_ref, b_ref):
        return jnp.dot(v, w_ref[...], preferred_element_type=jnp.float32) + b_ref[...]

    enc_s_mean = jax.nn.relu(lin(x_mean, w_se_ref, b_se_ref))
    enc_s_std = jax.nn.relu(lin(x_std, w_se_ref, b_se_ref))
    enc_r_mean = jax.nn.relu(lin(x_mean, w_re_ref, b_re_ref))
    enc_r_std = jax.nn.relu(lin(x_std, w_re_ref, b_re_ref))

    x_standard_mean = lin(enc_s_mean, w_smd_ref, b_smd_ref)
    x_standard_std = jax.nn.relu(lin(enc_s_std, w_ssd_ref, b_ssd_ref))
    x_rescale_beta = jnp.tanh(lin(enc_r_mean, w_rbd_ref, b_rbd_ref))
    x_rescale_gamma = jax.nn.sigmoid(lin(enc_r_std, w_rgd_ref, b_rgd_ref))

    lam_mu = lam_ref[0]        # sigmoid(lambda_mu), pre-applied in wrapper (as forward())
    lam_sigma = lam_ref[1]     # sigmoid(lambda_sigma)
    lam_beta = lam_ref[2]      # raw, exactly as forward()
    lam_gamma = lam_ref[3]

    mean = lam_mu * x_standard_mean + (1.0 - lam_mu) * x_mean
    std = lam_sigma * x_standard_std + (1.0 - lam_sigma) * x_std
    beta = lam_beta * x_rescale_beta + bias_beta_ref[...]
    gamma = lam_gamma * x_rescale_gamma + bias_gamma_ref[...]

    scale = gamma / std                        # fused epilogue: o = x*scale + shift
    scale_ref[...] = scale
    shift_ref[...] = beta - mean * scale


# --------------------------- phase 3: elementwise apply ---------------------------

def _apply_kernel(x_ref, scale_ref, shift_ref, o_ref):
    o_ref[...] = (x_ref[...].astype(jnp.float32) * scale_ref[...]
                  + shift_ref[...]).astype(o_ref.dtype)


# ------------------------------------ wrapper ------------------------------------

def asrnorm_bn1d(x, params, *, max_tile_n=2048):
    """ASRNormBN1d forward (eval mode). x: (N, C). params: dict from init_params."""
    N, C = x.shape
    assert N >= 2, "unbiased variance (torch.var) requires N >= 2"
    assert C >= 16, "dim must be >= 16 (rescale encoder width = dim // 16)"

    vmem_limit = _vmem_limit_bytes()
    budget = int(vmem_limit * 0.75)                  # leave headroom for compiler scratch
    itemsize = jnp.dtype(x.dtype).itemsize

    def choose_tile(per_row_bytes):
        t = max(1, budget // max(per_row_bytes, 1))
        t = min(t, max_tile_n)
        if t >= N:
            return N                                 # single full-extent block
        return max(8, (t // 8) * 8)

    # ---- phase 1: stats; grid = (C-slabs 'parallel', N-tiles 'arbitrary') ----
    c_slabs = 2 if (C % 256 == 0) else 1             # lets both v7x TensorCores reduce
    c_tile = C // c_slabs
    tile_n1 = choose_tile(2 * c_tile * itemsize)     # only the double-buffered x tile
    grid1 = (c_slabs, pl.cdiv(N, tile_n1))

    mean, m2 = pl.pallas_call(
        functools.partial(_stats_kernel, n_rows=N, tile_n=tile_n1),
        grid=grid1,
        in_specs=[pl.BlockSpec((tile_n1, c_tile), lambda ci, ni: (ni, ci))],
        out_specs=[pl.BlockSpec((1, c_tile), lambda ci, ni: (0, ci)),
                   pl.BlockSpec((1, c_tile), lambda ci, ni: (0, ci))],
        out_shape=[jax.ShapeDtypeStruct((1, C), jnp.float32),
                   jax.ShapeDtypeStruct((1, C), jnp.float32)],
        compiler_params=pltpu.CompilerParams(
            dimension_semantics=("parallel", "arbitrary"),
            vmem_limit_bytes=vmem_limit),
    )(x)

    # ---- phase 2: one-shot tiny MLPs (weights only resident here) ----
    lam_raw = params["lambdas"].reshape(-1).astype(jnp.float32)
    lam_vec = jnp.stack([jax.nn.sigmoid(lam_raw[0]), jax.nn.sigmoid(lam_raw[1]),
                         lam_raw[2], lam_raw[3]])

    weights = [params["w_se"], params["b_se"],
               params["w_smd"], params["b_smd"],
               params["w_ssd"], params["b_ssd"],
               params["w_re"], params["b_re"],
               params["w_rbd"], params["b_rbd"],
               params["w_rgd"], params["b_rgd"],
               params["bias_beta"], params["bias_gamma"]]

    def _full(a):
        return pl.BlockSpec(a.shape, lambda i: (0,) * a.ndim)

    scale, shift = pl.pallas_call(
        functools.partial(_mlp_kernel, n_rows=N),
        grid=(1,),
        in_specs=[_full(mean), _full(m2)] + [_full(w) for w in weights]
                 + [pl.BlockSpec(memory_space=pltpu.MemorySpace.SMEM)],
        out_specs=[pl.BlockSpec((1, C), lambda i: (0, 0)),
                   pl.BlockSpec((1, C), lambda i: (0, 0))],
        out_shape=[jax.ShapeDtypeStruct((1, C), jnp.float32),
                   jax.ShapeDtypeStruct((1, C), jnp.float32)],
        compiler_params=pltpu.CompilerParams(
            dimension_semantics=("arbitrary",),
            vmem_limit_bytes=vmem_limit),
    )(mean, m2, *weights, lam_vec)

    # ---- phase 3: elementwise apply, 'parallel' over N-tiles (no pad / no slice) ----
    tile_n2 = choose_tile(2 * C * itemsize + 2 * C * itemsize)   # in + out, double-buffered
    grid2 = (pl.cdiv(N, tile_n2),)

    return pl.pallas_call(
        _apply_kernel,
        grid=grid2,
        in_specs=[pl.BlockSpec((tile_n2, C), lambda i: (i, 0)),
                  pl.BlockSpec((1, C), lambda i: (0, 0)),
                  pl.BlockSpec((1, C), lambda i: (0, 0))],
        out_specs=pl.BlockSpec((tile_n2, C), lambda i: (i, 0)),
        out_shape=jax.ShapeDtypeStruct((N, C), x.dtype),
        compiler_params=pltpu.CompilerParams(
            dimension_semantics=("parallel",),
            vmem_limit_bytes=vmem_limit),
    )(x, scale, shift)


# --------------------------- params + pure-JAX reference ---------------------------

def init_params(dim, key):
    """Deterministic synthetic init matching ASRNormBN1d.__init__ shapes/values."""
    cs = dim // 2    # stan_mid_channel
    cr = dim // 16   # rsc_mid_channel
    assert cr >= 1, "dim must be >= 16 so the rescale encoder has >= 1 channel"

    keys = jax.random.split(key, 12)

    def lin(kw, kb, fan_in, fan_out):
        # torch.nn.Linear default init: U(-1/sqrt(fan_in), 1/sqrt(fan_in))
        bound = 1.0 / math.sqrt(fan_in)
        w = jax.random.uniform(kw, (fan_in, fan_out), jnp.float32, -bound, bound)
        b = jax.random.uniform(kb, (1, fan_out), jnp.float32, -bound, bound)
        return w, b

    w_se, b_se = lin(keys[0], keys[1], dim, cs)
    w_smd, b_smd = lin(keys[2], keys[3], cs, dim)
    w_ssd, b_ssd = lin(keys[4], keys[5], cs, dim)
    w_re, b_re = lin(keys[6], keys[7], dim, cr)
    w_rbd, b_rbd = lin(keys[8], keys[9], cr, dim)
    w_rgd, b_rgd = lin(keys[10], keys[11], cr, dim)

    # Raw nn.Parameter values exactly as PyTorch __init__ sets them:
    # lambda_mu = lambda_sigma = sigmoid(-3); lambda_beta = lambda_gamma = sigmoid(-5).
    # forward() applies sigmoid to mu/sigma again and uses beta/gamma raw.
    sig = lambda v: 1.0 / (1.0 + math.exp(-v))
    lambdas = jnp.array([sig(-3.0), sig(-3.0), sig(-5.0), sig(-5.0)], jnp.float32)

    return {
        "w_se": w_se, "b_se": b_se,
        "w_smd": w_smd, "b_smd": b_smd,
        "w_ssd": w_ssd, "b_ssd": b_ssd,
        "w_re": w_re, "b_re": b_re,
        "w_rbd": w_rbd, "b_rbd": b_rbd,
        "w_rgd": w_rgd, "b_rgd": b_rgd,
        "bias_beta": jnp.zeros((1, dim), jnp.float32),
        "bias_gamma": jnp.ones((1, dim), jnp.float32),
        "lambdas": lambdas,
    }


def asrnorm_bn1d_ref(x, p):
    """Pure-JAX reference of the PyTorch forward (eval mode)."""
    n = x.shape[0]
    x_mean = jnp.mean(x, axis=0, keepdims=True)
    var = jnp.sum((x - x_mean) ** 2, axis=0, keepdims=True) / (n - 1)
    x_std = jnp.sqrt(var) + EPS

    lin = lambda v, w, b: v @ w + b
    enc_mean = lin(x_mean, p["w_se"], p["b_se"])
    enc_std = lin(x_std, p["w_se"], p["b_se"])
    xsm = lin(jax.nn.relu(enc_mean), p["w_smd"], p["b_smd"])
    xss = jax.nn.relu(lin(jax.nn.relu(enc_std), p["w_ssd"], p["b_ssd"]))

    lam_mu = jax.nn.sigmoid(p["lambdas"][0])
    lam_sigma = jax.nn.sigmoid(p["lambdas"][1])
    mean = lam_mu * xsm + (1 - lam_mu) * x_mean
    std = lam_sigma * xss + (1 - lam_sigma) * x_std
    xn = (x - mean) / std

    enc_rb = lin(x_mean, p["w_re"], p["b_re"])
    enc_rg = lin(x_std, p["w_re"], p["b_re"])
    xrb = jnp.tanh(lin(jax.nn.relu(enc_rb), p["w_rbd"], p["b_rbd"]))
    xrg = jax.nn.sigmoid(lin(jax.nn.relu(enc_rg), p["w_rgd"], p["b_rgd"]))

    beta = p["lambdas"][2] * xrb + p["bias_beta"]
    gamma = p["lambdas"][3] * xrg + p["bias_gamma"]
    return xn * gamma + beta


if __name__ == "__main__":
    # C >= 16 required (C // 16 rescale-encoder width); N chosen so the grid
    # has multiple N-tiles AND a ragged last tile (exercises in-kernel masking).
    N, C = 70, 32
    key = jax.random.PRNGKey(0)
    kx, kp = jax.random.split(key)
    x = jax.random.normal(kx, (N, C), jnp.float32)
    params = init_params(C, kp)

    # small max_tile_n so the demo exercises a multi-step grid (5 N-tiles, last ragged)
    out = asrnorm_bn1d(x, params, max_tile_n=16)
    out = jax.block_until_ready(out)

    ref = asrnorm_bn1d_ref(x, params)
    assert out.shape == (N, C)
    err = float(jnp.max(jnp.abs(out - ref)))
    assert jnp.allclose(out, ref, atol=1e-5, rtol=1e-5), f"mismatch: max abs err {err}"
    print("KERNEL_OK")
</pallas_src>

<mosaic_0001>
module attributes {stable_mosaic.version = 11 : i64} {
  func.func @_stats_kernel(%arg0: i32, %arg1: i32, %arg2: memref<16x32xf32, #tpu.memory_space<vmem>>, %arg3: memref<1x32xf32, #tpu.memory_space<vmem>>, %arg4: memref<1x32xf32, #tpu.memory_space<vmem>>) attributes {dimension_semantics = [#tpu.dimension_semantics<parallel>, #tpu.dimension_semantics<arbitrary>], iteration_bounds = array<i64: 1, 5>, scalar_prefetch = 0 : i64, scratch_operands = 0 : i64, tpu.core_type = #tpu.core_type<tc>, window_params = [{transform_indices = @transform_0, window_bounds = array<i64: 16, 32>}, {transform_indices = @transform_1, window_bounds = array<i64: 1, 32>}, {transform_indices = @transform_2, window_bounds = array<i64: 1, 32>}]} {
    %c0_i32 = arith.constant 0 : i32
    %0 = arith.cmpi eq, %arg1, %c0_i32 : i32
    %1 = arith.extui %0 : i1 to i32
    %c0_i32_0 = arith.constant 0 : i32
    %2 = arith.cmpi ne, %1, %c0_i32_0 : i32
    scf.if %2 {
      %cst_17 = arith.constant 0.000000e+00 : f32
      %48 = vector.broadcast %cst_17 : f32 to vector<1x32xf32>
      %c0_18 = arith.constant 0 : index
      %c0_19 = arith.constant 0 : index
      %49 = vector.load %arg3[%c0_18, %c0_19] : memref<1x32xf32, #tpu.memory_space<vmem>>, vector<1x32xf32>
      tpu.vector_store %arg3[%c0_18, %c0_19], %48 {strides = array<i32>} : memref<1x32xf32, #tpu.memory_space<vmem>>, vector<1x32xf32>,
      %cst_20 = arith.constant 0.000000e+00 : f32
      %50 = vector.broadcast %cst_20 : f32 to vector<1x32xf32>
      %c0_21 = arith.constant 0 : index
      %c0_22 = arith.constant 0 : index
      %51 = vector.load %arg4[%c0_21, %c0_22] : memref<1x32xf32, #tpu.memory_space<vmem>>, vector<1x32xf32>
      tpu.vector_store %arg4[%c0_21, %c0_22], %50 {strides = array<i32>} : memref<1x32xf32, #tpu.memory_space<vmem>>, vector<1x32xf32>,
    } else {
    }
    %c0 = arith.constant 0 : index
    %c0_1 = arith.constant 0 : index
    %3 = vector.load %arg2[%c0, %c0_1] : memref<16x32xf32, #tpu.memory_space<vmem>>, vector<16x32xf32>
    %c16_i32 = arith.constant 16 : i32
    %4 = arith.muli %arg1, %c16_i32 : i32
    %c70_i32 = arith.constant 70 : i32
    %5 = arith.subi %c70_i32, %4 : i32
    %c16_i32_2 = arith.constant 16 : i32
    %6 = arith.minsi %c16_i32_2, %5 : i32
    %c16_i32_3 = arith.constant 16 : i32
    %7 = arith.muli %arg1, %c16_i32_3 : i32
    %8 = arith.sitofp %7 : i32 to f32
    %9 = arith.sitofp %6 : i32 to f32
    %10 = tpu.iota {dimensions = array<i32: 0>} : vector<16x1xi32>
    %11 = vector.broadcast %6 : i32 to vector<16x1xi32>
    %12 = arith.cmpi slt, %10, %11 : vector<16x1xi32>
    %cst = arith.constant 0.000000e+00 : f32
    %13 = vector.shape_cast %12 : vector<16x1xi1> to vector<16x1xi1>
    %14 = vector.broadcast %13 : vector<16x1xi1> to vector<16x32xi1>
    %15 = vector.broadcast %cst : f32 to vector<16x32xf32>
    %16 = arith.select %14, %3, %15 : vector<16x32xi1>, vector<16x32xf32>
    %cst_4 = arith.constant dense<0.000000e+00> : vector<32xf32>
    %17 = vector.multi_reduction <add>, %16, %cst_4 [0] : vector<16x32xf32> to vector<32xf32>
    %18 = vector.shape_cast %17 : vector<32xf32> to vector<1x32xf32>
    %19 = vector.broadcast %9 : f32 to vector<1x32xf32>
    %20 = arith.divf %18, %19 : vector<1x32xf32>
    %21 = vector.broadcast %20 : vector<1x32xf32> to vector<16x32xf32>
    %22 = arith.subf %3, %21 : vector<16x32xf32>
    %23 = arith.mulf %22, %22 : vector<16x32xf32>
    %cst_5 = arith.constant 0.000000e+00 : f32
    %24 = vector.shape_cast %12 : vector<16x1xi1> to vector<16x1xi1>
    %25 = vector.broadcast %24 : vector<16x1xi1> to vector<16x32xi1>
    %26 = vector.broadcast %cst_5 : f32 to vector<16x32xf32>
    %27 = arith.select %25, %23, %26 : vector<16x32xi1>, vector<16x32xf32>
    %cst_6 = arith.constant dense<0.000000e+00> : vector<32xf32>
    %28 = vector.multi_reduction <add>, %27, %cst_6 [0] : vector<16x32xf32> to vector<32xf32>
    %29 = vector.shape_cast %28 : vector<32xf32> to vector<1x32xf32>
    %30 = arith.addf %8, %9 : f32
    %c0_7 = arith.constant 0 : index
    %c0_8 = arith.constant 0 : index
    %31 = vector.load %arg3[%c0_7, %c0_8] : memref<1x32xf32, #tpu.memory_space<vmem>>, vector<1x32xf32>
    %32 = arith.subf %20, %31 : vector<1x32xf32>
    %c0_9 = arith.constant 0 : index
    %c0_10 = arith.constant 0 : index
    %33 = vector.load %arg3[%c0_9, %c0_10] : memref<1x32xf32, #tpu.memory_space<vmem>>, vector<1x32xf32>
    %34 = arith.divf %9, %30 : f32
    %35 = vector.broadcast %34 : f32 to vector<1x32xf32>
    %36 = arith.mulf %32, %35 : vector<1x32xf32>
    %37 = arith.addf %33, %36 : vector<1x32xf32>
    %c0_11 = arith.constant 0 : index
    %c0_12 = arith.constant 0 : index
    %38 = vector.load %arg3[%c0_11, %c0_12] : memref<1x32xf32, #tpu.memory_space<vmem>>, vector<1x32xf32>
    tpu.vector_store %arg3[%c0_11, %c0_12], %37 {strides = array<i32>} : memref<1x32xf32, #tpu.memory_space<vmem>>, vector<1x32xf32>,
    %c0_13 = arith.constant 0 : index
    %c0_14 = arith.constant 0 : index
    %39 = vector.load %arg4[%c0_13, %c0_14] : memref<1x32xf32, #tpu.memory_space<vmem>>, vector<1x32xf32>
    %40 = arith.addf %39, %29 : vector<1x32xf32>
    %41 = arith.mulf %32, %32 : vector<1x32xf32>
    %42 = arith.mulf %8, %9 : f32
    %43 = arith.divf %42, %30 : f32
    %44 = vector.broadcast %43 : f32 to vector<1x32xf32>
    %45 = arith.mulf %41, %44 : vector<1x32xf32>
    %46 = arith.addf %40, %45 : vector<1x32xf32>
    %c0_15 = arith.constant 0 : index
    %c0_16 = arith.constant 0 : index
    %47 = vector.load %arg4[%c0_15, %c0_16] : memref<1x32xf32, #tpu.memory_space<vmem>>, vector<1x32xf32>
    tpu.vector_store %arg4[%c0_15, %c0_16], %46 {strides = array<i32>} : memref<1x32xf32, #tpu.memory_space<vmem>>, vector<1x32xf32>,
    return
  }
  func.func @transform_0(%arg0: i32, %arg1: i32) -> (i32, i32) {
    %c0_i32 = arith.constant 0 : i32
    return %arg1, %arg0 : i32, i32
  }
  func.func @transform_1(%arg0: i32, %arg1: i32) -> (i32, i32) {
    %c0_i32 = arith.constant 0 : i32
    %c0_i32_0 = arith.constant 0 : i32
    return %c0_i32, %arg0 : i32, i32
  }
  func.func @transform_2(%arg0: i32, %arg1: i32) -> (i32, i32) {
    %c0_i32 = arith.constant 0 : i32
    %c0_i32_0 = arith.constant 0 : i32
    return %c0_i32, %arg0 : i32, i32
  }
}

</mosaic_0001>

<llo_original>
// kernel: tpu_custom_call.1
$region0: #{tpu_custom_call.1}
  #allocation0 [shape = 'u32[]', space=smem, size = 0x4, offset = 0x4, fixed_abs, tag = 'smem constant byte address 0x4 - core index']
  #allocation1 [shape = 'u32[144,128]{1,0:T(1,128)}', space=vmem, size = 0x12000, scoped, tag = 'internal scratch']
  %s0 = inlined_call_operand.vmem [shape: f32[70,32], index: 0, kind: input, shape index: {}]
  %s1 = inlined_call_operand.hbm [shape: f32[1,32], index: 1, kind: output, shape index: {0}]
  %s2 = inlined_call_operand.hbm [shape: f32[1,32], index: 2, kind: output, shape index: {1}]
  %3 = xla_tuple %s1, %s2
  %s4 = sld [smem:[#allocation0]]
  $region49: #{tpu_custom_call.1} parent=0
    _
  %s6 = ssub.s32 1, %s4
  %s7 = scalar_select 0, %s6, %s4
  $region1: #{tpu_custom_call.1} parent=0
    #allocation2 [shape = 'u8[512]{0}', space=vmem, size = 0x400, scoped, tag = 'output window, operand 0, single buffered']
    #allocation3 [shape = 's32[2]{0}', space=sflag, size = 0x8, scoped, tag = 'scoped memory for tpu_custom_call.1']
    #allocation4 [shape = 'u8[512]{0}', space=vmem, size = 0x400, scoped, tag = 'output window, operand 1, single buffered']
    #allocation5 [shape = 's32[1]{0}', space=sflag, size = 0x4, scoped, tag = 'scoped memory for tpu_custom_call.1']
    %8 = vsyncpa [#allocation3], 0
    %9 = vsyncpa [#allocation5], 0
    loop: start=0, step=1, limit=7
    $region2: #{tpu_custom_call.1} parent=1 // loop_pre_header
      _
    $region3: #{tpu_custom_call.1} parent=1 // loop_header
      %s11 = sphi 0, %s15
      %p12 = scmp.ge.s32.totalorder %s11, 7
      %s18 = sphi 0, %s30
      %s19 = sphi 0, %s26
      %s20 = sphi 0, %s18
      %s21 = sphi 0, %s19
      %s22 = sphi 0, %s20
      %s23 = sphi 0, %s21
      %s35 = sphi 0, %s37
      %s38 = sphi 0, %s35
      %s39 = sphi 0, %s38
      %s55 = sphi 0, %s39
      %s61 = sphi 0, %s63
      %s64 = sphi 0, %s61
      %s65 = sphi 0, %s64
      %s81 = sphi 0, %s65
      %s87 = sphi 0, %s89
      %s90 = sphi 0, %s87
      %s91 = sphi 0, %s90
      %s107 = sphi 0, %s91
    $region4: #{tpu_custom_call.1} parent=1 // loop_header_branch
      %14 = sbr.rel (%p12) target = $region8
    $region5: #{tpu_custom_call.1} parent=1 // loop_body
      %s16 = ssub.s32 %s11, 1
      %s17 = ssub.s32 %s11, 2
      %s24 = sadd.s32 1, %s19
      %p25 = scmp.ge.s32.totalorder %s24, 5
      %s26 = scalar_select %p25, 0, %s24
      %s27 = sadd.s32 1, %s18
      %s28 = scalar_select %p25, %s27, %s18
      %p29 = scmp.ge.s32.totalorder %s28, 1
      %s30 = scalar_select %p29, 0, %s28
      %s31 = ssub.s32 %s19, %s26
      %s32 = ssub.s32 %s18, %s30
      %s33 = sor.u32 %s31, %s32
      %p34 = scmp.eq.s32.totalorder %s33, 0
      %s36 = sadd.s32 %s35, 1
      %s37 = scalar_select %p34, %s35, %s36
      %p40 = pneg %p34
      %p41 = scmp.eq.s32.totalorder %s11, 4
      %p42 = por %p40, %p41
      %p43 = scmp.ne.s32.totalorder %s35, %s38
      %p44 = scmp.eq.s32.totalorder %s11, 0
      %p45 = por %p43, %p44
      %p46 = scmp.ne.s32.totalorder %s35, %s38
      %p47 = scmp.eq.s32.totalorder %s16, 4
      %p48 = por %p46, %p47
      %p49 = scmp.ne.s32.totalorder %s38, %s39
      %p50 = scmp.eq.s32.totalorder %s16, 0
      %p51 = por %p49, %p50
      %p52 = scmp.ne.s32.totalorder %s38, %s39
      %p53 = scmp.eq.s32.totalorder %s17, 4
      %p54 = por %p52, %p53
      %p56 = scmp.ne.s32.totalorder %s39, %s55
      %p57 = scmp.eq.s32.totalorder %s17, 0
      %p58 = por %p56, %p57
      %s59 = ssub.s32 %s18, %s30
      %p60 = scmp.eq.s32.totalorder %s59, 0
      %s62 = sadd.s32 %s61, 1
      %s63 = scalar_select %p60, %s61, %s62
      %p66 = pneg %p60
      %p67 = scmp.eq.s32.totalorder %s11, 4
      %p68 = por %p66, %p67
      %p69 = scmp.ne.s32.totalorder %s61, %s64
      %p70 = scmp.eq.s32.totalorder %s11, 0
      %p71 = por %p69, %p70
      %p72 = scmp.ne.s32.totalorder %s61, %s64
      %p73 = scmp.eq.s32.totalorder %s16, 4
      %p74 = por %p72, %p73
      %p75 = scmp.ne.s32.totalorder %s64, %s65
      %p76 = scmp.eq.s32.totalorder %s16, 0
      %p77 = por %p75, %p76
      %p78 = scmp.ne.s32.totalorder %s64, %s65
      %p79 = scmp.eq.s32.totalorder %s17, 4
      %p80 = por %p78, %p79
      %p82 = scmp.ne.s32.totalorder %s65, %s81
      %p83 = scmp.eq.s32.totalorder %s17, 0
      %p84 = por %p82, %p83
      %s85 = ssub.s32 %s18, %s30
      %p86 = scmp.eq.s32.totalorder %s85, 0
      %s88 = sadd.s32 %s87, 1
      %s89 = scalar_select %p86, %s87, %s88
      %p92 = pneg %p86
      %p93 = scmp.eq.s32.totalorder %s11, 4
      %p94 = por %p92, %p93
      %p95 = scmp.ne.s32.totalorder %s87, %s90
      %p96 = scmp.eq.s32.totalorder %s11, 0
      %p97 = por %p95, %p96
      %p98 = scmp.ne.s32.totalorder %s87, %s90
      %p99 = scmp.eq.s32.totalorder %s16, 4
      %p100 = por %p98, %p99
      %p101 = scmp.ne.s32.totalorder %s90, %s91
      %p102 = scmp.eq.s32.totalorder %s16, 0
      %p103 = por %p101, %p102
      %p104 = scmp.ne.s32.totalorder %s90, %s91
      %p105 = scmp.eq.s32.totalorder %s17, 4
      %p106 = por %p104, %p105
      %p108 = scmp.ne.s32.totalorder %s91, %s107
      %p109 = scmp.eq.s32.totalorder %s17, 0
      %p110 = por %p108, %p109
      %p111 = scmp.le.s32.totalorder 1, %s11
      %p112 = scmp.lt.s32.totalorder %s11, 6
      %p113 = pnand %p111, %p112
      %p114 = pneg %p113
      // Predicated region
      $region9: #{tpu_custom_call.1} parent=5 // pred_check
        _
      $region10: #{tpu_custom_call.1} parent=5 // pred_check_branch
        %116 = sbr.rel (%p113) target = $region12
      $region11: #{tpu_custom_call.1} parent=5 // pred_region
        %s117 = ssub.s32 %s11, 1
      $region12: #{tpu_custom_call.1} parent=5 // pred_fallthru
        _
      %p118 = scmp.lt.s32.totalorder %s11, 5
      // Predicated region
      $region13: #{tpu_custom_call.1} parent=5 // pred_check
        %p119 = pneg %p118
      $region14: #{tpu_custom_call.1} parent=5 // pred_check_branch
        %121 = sbr.rel (%p119) target = $region16
      $region15: #{tpu_custom_call.1} parent=5 // pred_region
        // Predicated region
        $region17: #{tpu_custom_call.1} parent=15 // pred_check
          %p122 = pneg %p45
        $region18: #{tpu_custom_call.1} parent=15 // pred_check_branch
          %124 = sbr.rel (%p122) target = $region20
        $region19: #{tpu_custom_call.1} parent=15 // pred_region
          %s125 = smul.u32 2, %s19
          %s126 = ssub.s32 9, %s125
          %p127 = scmp.lt.s32.totalorder %s126, 2
          %s128 = scalar_select %p127, %s126, 2
          %s129 = smul.u32 128, %s128
          %p130 = scmp.lt.s32.totalorder %s125, 8
          %s131 = scalar_select %p130, %s125, 8
          %p132 = scmp.lt.s32.totalorder %s18, 0
          %s133 = scalar_select %p132, %s18, 0
          %s134 = sadd.s32 %s133, %s131
          %s135 = smul.addr %s134, 8
          %s136 = scalar_lea.vmem %s0, %s135
          %s137 = smul.u32 2, %s19
          %s138 = ssub.s32 9, %s137
          %p139 = scmp.lt.s32.totalorder %s138, 2
          %s140 = scalar_select %p139, %s138, 2
          %s141 = smul.u32 128, %s140
        $region20: #{tpu_custom_call.1} parent=15 // pred_fallthru
          _
      $region16: #{tpu_custom_call.1} parent=5 // pred_fallthru
        _
      %p142 = scmp.le.s32.totalorder 1, %s11
      %p143 = scmp.lt.s32.totalorder %s11, 6
      %p144 = pnand %p142, %p143
      %p145 = pneg %p144
      // Predicated region
      $region21: #{tpu_custom_call.1} parent=5 // pred_check
        _
      $region22: #{tpu_custom_call.1} parent=5 // pred_check_branch
        %147 = sbr.rel (%p144) target = $region24
      $region23: #{tpu_custom_call.1} parent=5 // pred_region
        %s148 = ssub.s32 %s11, 1
        %s149 = smul.u32 2, %s21
        %s150 = ssub.s32 9, %s149
        %p151 = scmp.lt.s32.totalorder %s150, 2
        %s152 = scalar_select %p151, %s150, 2
        %s153 = smul.u32 128, %s152
        %p154 = scmp.lt.s32.totalorder %s149, 8
        %s155 = scalar_select %p154, %s149, 8
        %p156 = scmp.lt.s32.totalorder %s20, 0
        %s157 = scalar_select %p156, %s20, 0
        %s158 = sadd.s32 %s157, %s155
        %s159 = smul.addr %s158, 8
        %s160 = scalar_lea.vmem %s0, %s159
        %p161 = pneg %p51
        %p162 = pneg %p48
        %p163 = pneg %p77
        %p164 = pneg %p74
        %p165 = pneg %p103
        %p166 = pneg %p100
        %s167 = smul.u32 2, %s21
        %s168 = ssub.s32 9, %s167
        %p169 = scmp.lt.s32.totalorder %s168, 2
        %s170 = scalar_select %p169, %s168, 2
        %s171 = smul.u32 128, %s170
        %p172 = scmp.lt.s32.totalorder %s167, 8
        %s173 = scalar_select %p172, %s167, 8
        %p174 = scmp.lt.s32.totalorder %s20, 0
        %s175 = scalar_select %p174, %s20, 0
        %s176 = sadd.s32 %s175, %s173
        %s177 = smul.addr %s176, 8
        %s178 = scalar_lea.vmem %s0, %s177
        %s179 = smul.u32 2, %s21
        %s180 = ssub.s32 9, %s179
        %p181 = scmp.lt.s32.totalorder %s180, 2
        %s182 = scalar_select %p181, %s180, 2
        %s183 = smul.u32 128, %s182
        %p184 = scmp.eq.s32.totalorder %s21, 0
        // Predicated region
        $region25: #{tpu_custom_call.1} parent=23 // pred_check
          %p185 = pneg %p184
        $region26: #{tpu_custom_call.1} parent=23 // pred_check_branch
          %187 = sbr.rel (%p185) target = $region28
        $region27: #{tpu_custom_call.1} parent=23 // pred_region
          %vm188 = vcmask 253952
          %189 = vst.msk [vmem:[#allocation2] sm:$0x1] %vm188, 0.0
          %190 = vst.msk [vmem:[#allocation4] sm:$0x1] %vm188, 0.0
        $region28: #{tpu_custom_call.1} parent=23 // pred_fallthru
          _
        %v191 = vld [vmem:[%s178] sm:$0xff]
        %v192 = vld [vmem:[%s178 + $0x8] sm:$0xff]
        %s193 = smul.u32 %s21, 16
        %s194 = ssub.s32 70, %s193
        %p195 = scmp.lt.s32.totalorder %s194, 16
        %s196 = scalar_select %p195, %s194, 16
        %s197 = scvt.s32.f32 %s193
        %s198 = scvt.s32.f32 %s196
        %v199 = vlaneseq
        %v200 = vshrl.u32 %v199, 7
        %v201 = vadd.s32 %v200, 8
        %v202 = vstv %s196
        %vm203 = vcmp.lt.s32.totalorder %v200, %v202
        %vm204 = vcmp.lt.s32.totalorder %v201, %v202
        %v205 = vsel %vm203, 1, 0
        %v206 = vsel %vm204, 1, 0
        %vm207 = vcmp.eq.s32.totalorder %v205, 1
        %vm208 = vcmp.eq.s32.totalorder %v206, 1
        %v209 = vsel %vm207, %v191, 0.0
        %v210 = vsel %vm208, %v192, 0.0
        %vm211 = vcmask 261120
        %v212 = vsel %vm211, %v209, 0.0
        %v213 = vsel %vm211, %v210, 0.0
        %v214 = vadd.f32 %v212, %v213
        %v215 = vrot.slane %v214, 4
        %v216 = vadd.f32 %v214, %v215
        %v217 = vrot.slane %v216, 2
        %v218 = vadd.f32 %v216, %v217
        %v219 = vrot.slane %v218, 1
        %v220 = vadd.f32 %v218, %v219
        %v221 = vstv %s198
        %v222 = vrcp.pop %v221
        %v223 = vmul.f32 %v220, %v222
        %v224 = vsub.f32 %v191, %v223
        %v225 = vsub.f32 %v192, %v223
        %v226 = vmul.f32 %v224, %v224
        %v227 = vmul.f32 %v225, %v225
        %v228 = vsel %vm207, %v226, 0.0
        %v229 = vsel %vm208, %v227, 0.0
        %v230 = vsel %vm211, %v228, 0.0
        %v231 = vsel %vm211, %v229, 0.0
        %v232 = vadd.f32 %v230, %v231
        %v233 = vrot.slane %v232, 4
        %v234 = vadd.f32 %v232, %v233
        %v235 = vrot.slane %v234, 2
        %v236 = vadd.f32 %v234, %v235
        %v237 = vrot.slane %v236, 1
        %v238 = vadd.f32 %v236, %v237
        %s239 = sadd.f32 %s197, %s198
        %v240 = vld [vmem:[#allocation2] sm:$0x1]
        %v241 = vsub.f32 %v223, %v240
        %v242 = vstv %s239
        %v243 = vrcp.pop %v242
        %s244 = vtos %v243
        %s245 = smul.f32 %s198, %s244
        %v246 = vstv %s245
        %v247 = vmul.f32 %v241, %v246
        %v248 = vadd.f32 %v240, %v247
        %vm249 = vcmask 253952
        %250 = vst.msk [vmem:[#allocation2] sm:$0x1] %vm249, %v248
        %v251 = vld [vmem:[#allocation4] sm:$0x1]
        %v252 = vadd.f32 %v251, %v238
        %v253 = vmul.f32 %v241, %v241
        %s254 = smul.f32 %s197, %s198
        %v255 = vstv %s239
        %v256 = vrcp.pop %v255
        %s257 = vtos %v256
        %s258 = smul.f32 %s254, %s257
        %v259 = vstv %s258
        %v260 = vmul.f32 %v253, %v259
        %v261 = vadd.f32 %v252, %v260
        %262 = vst.msk [vmem:[#allocation4] sm:$0x1] %vm249, %v261
        // Predicated region
        $region29: #{tpu_custom_call.1} parent=23 // pred_check
          %p263 = pneg %p74
        $region30: #{tpu_custom_call.1} parent=23 // pred_check_branch
          %265 = sbr.rel (%p263) target = $region32
        $region31: #{tpu_custom_call.1} parent=23 // pred_region
          %s267 = ssub.s32 16, 16
          %268 = vsyncadd [#allocation3], %s267
          %s269 = smul.addr %s20, 16
          %s270 = scalar_lea.hbm %s1, %s269
          %s272 = sshll.u32 [#allocation2], 4
          %s273 = int_to_ptr.vmem [resolvable:$true] %s272
          %275 = dma.vmem_to_hbm [thread:$0]  %s273, 16, %s270, [#allocation3]
        $region32: #{tpu_custom_call.1} parent=23 // pred_fallthru
          _
        // Predicated region
        $region33: #{tpu_custom_call.1} parent=23 // pred_check
          %p276 = pneg %p100
        $region34: #{tpu_custom_call.1} parent=23 // pred_check_branch
          %278 = sbr.rel (%p276) target = $region36
        $region35: #{tpu_custom_call.1} parent=23 // pred_region
          %s280 = ssub.s32 16, 16
          %281 = vsyncadd [#allocation5], %s280
          %s282 = smul.addr %s20, 16
          %s283 = scalar_lea.hbm %s2, %s282
          %s285 = sshll.u32 [#allocation4], 4
          %s286 = int_to_ptr.vmem [resolvable:$true] %s285
          %288 = dma.vmem_to_hbm [thread:$0]  %s286, 16, %s283, [#allocation5]
        $region36: #{tpu_custom_call.1} parent=23 // pred_fallthru
          _
        // Predicated region
        $region37: #{tpu_custom_call.1} parent=23 // pred_check
          %p289 = pneg %p74
        $region38: #{tpu_custom_call.1} parent=23 // pred_check_branch
          %291 = sbr.rel (%p289) target = $region40
        $region39: #{tpu_custom_call.1} parent=23 // pred_region
          %292 = dma.done [#allocation3], 16
        $region40: #{tpu_custom_call.1} parent=23 // pred_fallthru
          _
        // Predicated region
        $region41: #{tpu_custom_call.1} parent=23 // pred_check
          %p293 = pneg %p100
        $region42: #{tpu_custom_call.1} parent=23 // pred_check_branch
          %295 = sbr.rel (%p293) target = $region44
        $region43: #{tpu_custom_call.1} parent=23 // pred_region
          %296 = dma.done [#allocation5], 16
        $region44: #{tpu_custom_call.1} parent=23 // pred_fallthru
          _
      $region24: #{tpu_custom_call.1} parent=5 // pred_fallthru
        _
      %p297 = scmp.le.s32.totalorder 2, %s11
      // Predicated region
      $region45: #{tpu_custom_call.1} parent=5 // pred_check
        %p298 = pneg %p297
      $region46: #{tpu_custom_call.1} parent=5 // pred_check_branch
        %300 = sbr.rel (%p298) target = $region48
      $region47: #{tpu_custom_call.1} parent=5 // pred_region
        %s301 = ssub.s32 %s11, 2
      $region48: #{tpu_custom_call.1} parent=5 // pred_fallthru
        _
    $region6: #{tpu_custom_call.1} parent=1 // loop_footer
      %s15 = sadd.s32 1, %s11
    $region7: #{tpu_custom_call.1} parent=1 // loop_footer_branch
      %10 = sbr.rel target = $region3
    $region8: #{tpu_custom_call.1} parent=1 // loop_exit
      _
    %302 = vsyncpa [#allocation3], 1
    %s303 = scalar_lea.sflag [#allocation3], 1
    %304 = vsyncpa %s303, 1
    %305 = vsyncpa [#allocation5], 1

</llo_original>
